<compile_context>
chip_gen: v7x
topology: tpu7x:2x2x1
jax: 0.10.0
libtpu: 0.0.40
codegen_flags: <defaults>
</compile_context>

<pallas_src>
import jax
import jax.numpy as jnp
from jax import lax
from jax.experimental import pallas as pl
from jax.experimental.pallas import tpu as pltpu

LN_EPS = 1e-5  # PyTorch nn.LayerNorm default


def _round_up(x, m):
    return ((x + m - 1) // m) * m


def _layernorm_f32(x, gb):
    # x: (tm, D) f32, gb: (2, D) f32 (row 0 = gamma, row 1 = beta)
    mean = jnp.mean(x, axis=-1, keepdims=True)
    centered = x - mean
    var = jnp.mean(centered * centered, axis=-1, keepdims=True)
    xn = centered * lax.rsqrt(var + LN_EPS)
    return xn * gb[0:1, :] + gb[1:2, :]


def _metadecoder_kernel_fused(x_ref, gb_ref, w_ref, o_ref):
    # Single class tile: LayerNorm + matmul inline, no scratch round-trip.
    # x_ref:  (tm, D)   gb_ref: (2, D)   w_ref: (D, C)   o_ref: (tm, C)
    y = _layernorm_f32(x_ref[...].astype(jnp.float32), gb_ref[...])
    o_ref[...] = jnp.dot(
        y.astype(w_ref.dtype), w_ref[...], preferred_element_type=jnp.float32
    ).astype(o_ref.dtype)


def _metadecoder_kernel_ctiled(x_ref, gb_ref, w_ref, o_ref, y_ref):
    # Multiple class tiles: compute LayerNorm once per row tile (class tile 0),
    # cache the bf16 activations in VMEM scratch, reuse for all class tiles.
    # x_ref:  (tm, D)   gb_ref: (2, D)   w_ref: (D, tc)
    # o_ref:  (tm, tc)  y_ref: (tm, D) scratch in matmul dtype
    @pl.when(pl.program_id(1) == 0)
    def _():
        y = _layernorm_f32(x_ref[...].astype(jnp.float32), gb_ref[...])
        y_ref[...] = y.astype(y_ref.dtype)

    o_ref[...] = jnp.dot(
        y_ref[...], w_ref[...], preferred_element_type=jnp.float32
    ).astype(o_ref.dtype)


def metadecoder_forward(x, gamma, beta, w, *, tm=512, tc=512,
                        matmul_dtype=jnp.bfloat16):
    """metadecoder.forward.

    x:     [B, T, D]   input
    gamma: [D]         LayerNorm weight
    beta:  [D]         LayerNorm bias
    w:     [C, D]      Linear weight (torch layout, no bias)
    returns [B, T, C]
    """
    B, T, D = x.shape
    C = w.shape[0]
    N = B * T

    # Host-side prep: transpose + cast the weight once (no per-step cast in
    # the kernel), stack gamma/beta into one (2, D) f32 array.
    w_t = jnp.asarray(w).T.astype(matmul_dtype)                 # (D, C)
    gb = jnp.stack([jnp.asarray(gamma), jnp.asarray(beta)], 0).astype(jnp.float32)

    # Row tiling: multiple of 8 (sublane), capped by the (padded) row count.
    tm_eff = min(tm, _round_up(N, 8))
    N_pad = _round_up(N, tm_eff)

    # Class tiling: tc must be a multiple of 128 and divide C; otherwise fall
    # back to one full-width class block.
    tc_eff = tc if (tc % 128 == 0 and C % tc == 0) else C
    n_ctiles = pl.cdiv(C, tc_eff)

    x2d = x.reshape(N, D)
    if N_pad != N:
        x2d = jnp.pad(x2d, ((0, N_pad - N), (0, 0)))

    # Explicit scoped-VMEM budget: double buffers for x, w, out (+ gamma/beta
    # + LN scratch), ~30% headroom, clamped to [16 MiB, 64 MiB] (v7x per-TC).
    itemsize_x = jnp.dtype(x.dtype).itemsize
    itemsize_w = jnp.dtype(matmul_dtype).itemsize
    block_bytes = (2 * tm_eff * D * itemsize_x
                   + 2 * D * tc_eff * itemsize_w
                   + 2 * tm_eff * tc_eff * itemsize_x
                   + 2 * 2 * D * 4
                   + tm_eff * D * itemsize_w)       # LN scratch (ctiled path)
    vmem_bytes = int(block_bytes * 1.3) + (4 << 20)
    vmem_bytes = min(max(vmem_bytes, 16 << 20), 64 << 20)

    grid = (N_pad // tm_eff, n_ctiles)

    if n_ctiles == 1:
        kernel = _metadecoder_kernel_fused
        scratch_shapes = []
    else:
        kernel = _metadecoder_kernel_ctiled
        scratch_shapes = [pltpu.VMEM((tm_eff, D), matmul_dtype)]

    out2d = pl.pallas_call(
        kernel,
        out_shape=jax.ShapeDtypeStruct((N_pad, C), x.dtype),
        grid_spec=pltpu.PrefetchScalarGridSpec(
            num_scalar_prefetch=0,
            grid=grid,
            in_specs=[
                pl.BlockSpec((tm_eff, D), lambda i, j: (i, 0)),   # x rows
                pl.BlockSpec((2, D), lambda i, j: (0, 0)),        # gamma/beta
                pl.BlockSpec((D, tc_eff), lambda i, j: (0, j)),   # weight slice
            ],
            out_specs=pl.BlockSpec((tm_eff, tc_eff), lambda i, j: (i, j)),
            scratch_shapes=scratch_shapes,
        ),
        compiler_params=pltpu.CompilerParams(
            # Class axis carries the LN scratch -> "arbitrary"; rows stay
            # "parallel" so megacore (v7x) can shard row tiles across TCs.
            dimension_semantics=("parallel", "arbitrary"),
            vmem_limit_bytes=vmem_bytes,
        ),
    )(x2d, gb, w_t)

    return out2d[:N].reshape(B, T, C)


def metadecoder_reference(x, gamma, beta, w, *, matmul_dtype=jnp.float32):
    xf = x.astype(jnp.float32)
    mean = jnp.mean(xf, axis=-1, keepdims=True)
    var = jnp.mean((xf - mean) ** 2, axis=-1, keepdims=True)
    xn = (xf - mean) / jnp.sqrt(var + LN_EPS)
    y = xn * gamma.astype(jnp.float32) + beta.astype(jnp.float32)
    return jnp.einsum(
        "btd,dc->btc",
        y.astype(matmul_dtype),
        w.T.astype(matmul_dtype),
        preferred_element_type=jnp.float32,
    ).astype(x.dtype)


if __name__ == "__main__":
    # Small shapes consistent with the module's forward.
    d_model = 128
    classes = 256

    key = jax.random.PRNGKey(0)
    k_x, k_x2, k_w, k_g, k_b = jax.random.split(key, 5)

    # Deterministic synthetic parameters (shapes from __init__):
    #  norm = nn.LayerNorm(d_model)                   -> gamma [D], beta [D]
    #  ff   = nn.Linear(d_model, classes, bias=False) -> weight [classes, d_model]
    gamma = 1.0 + 0.01 * jax.random.normal(k_g, (d_model,), dtype=jnp.float32)
    beta = 0.01 * jax.random.normal(k_b, (d_model,), dtype=jnp.float32)
    w = jax.random.normal(k_w, (classes, d_model), dtype=jnp.float32) * (
        1.0 / jnp.sqrt(d_model)
    )

    # TODO(synk): the `encode = combiner(d_model)` submodule exists in __init__
    # but is unused in metadecoder.forward, so it is intentionally not built.

    # Case 1: nicely shaped rows, single class tile (fused kernel).
    # Case 2: ragged row count (padding path).
    # Case 3: forced class tiling (tc=128 -> 2 class tiles, scratch kernel).
    cases = [
        (2, 8, k_x, 512),
        (3, 7, k_x2, 512),
        (2, 8, k_x, 128),
    ]
    for (B, T, kx, tc) in cases:
        x = jax.random.normal(kx, (B, T, d_model), dtype=jnp.float32)

        out = jax.block_until_ready(metadecoder_forward(x, gamma, beta, w, tc=tc))
        assert out.shape == (B, T, classes)

        # Tight check vs a reference that also does the matmul in bf16.
        ref_bf16 = metadecoder_reference(x, gamma, beta, w,
                                         matmul_dtype=jnp.bfloat16)
        assert jnp.allclose(out, ref_bf16, atol=1e-4, rtol=1e-4), float(
            jnp.max(jnp.abs(out - ref_bf16))
        )

        # Loose check vs the full-f32 PyTorch-equivalent reference
        # (bf16 operands with f32 accumulation).
        ref_f32 = metadecoder_reference(x, gamma, beta, w,
                                        matmul_dtype=jnp.float32)
        assert jnp.allclose(out, ref_f32, atol=5e-2, rtol=5e-2), float(
            jnp.max(jnp.abs(out - ref_f32))
        )

    print("KERNEL_OK")
</pallas_src>

<mosaic_0001>
module attributes {stable_mosaic.version = 11 : i64} {
  func.func @_metadecoder_kernel_fused(%arg0: i32, %arg1: i32, %arg2: memref<16x128xf32, #tpu.memory_space<vmem>>, %arg3: memref<2x128xf32, #tpu.memory_space<vmem>>, %arg4: memref<128x256xbf16, #tpu.memory_space<vmem>>, %arg5: memref<16x256xf32, #tpu.memory_space<vmem>>) attributes {dimension_semantics = [#tpu.dimension_semantics<parallel>, #tpu.dimension_semantics<arbitrary>], iteration_bounds = array<i64: 1, 1>, scalar_prefetch = 0 : i64, scratch_operands = 0 : i64, tpu.core_type = #tpu.core_type<tc>, window_params = [{transform_indices = @transform_0, window_bounds = array<i64: 16, 128>}, {pipeline_mode = #tpu.pipeline_mode<synchronous>, transform_indices = @transform_1, window_bounds = array<i64: 2, 128>}, {transform_indices = @transform_2, window_bounds = array<i64: 128, 256>}, {transform_indices = @transform_3, window_bounds = array<i64: 16, 256>}]} {
    %c0 = arith.constant 0 : index
    %c0_0 = arith.constant 0 : index
    %0 = vector.load %arg2[%c0, %c0_0] : memref<16x128xf32, #tpu.memory_space<vmem>>, vector<16x128xf32>
    %c0_1 = arith.constant 0 : index
    %c0_2 = arith.constant 0 : index
    %1 = vector.load %arg3[%c0_1, %c0_2] : memref<2x128xf32, #tpu.memory_space<vmem>>, vector<2x128xf32>
    %cst = arith.constant dense<0.000000e+00> : vector<16xf32>
    %2 = vector.multi_reduction <add>, %0, %cst [1] : vector<16x128xf32> to vector<16xf32>
    %3 = vector.shape_cast %2 : vector<16xf32> to vector<16x1xf32>
    %cst_3 = arith.constant 1.280000e+02 : f32
    %4 = vector.broadcast %cst_3 : f32 to vector<16x1xf32>
    %5 = arith.divf %3, %4 : vector<16x1xf32>
    %6 = vector.broadcast %5 : vector<16x1xf32> to vector<16x128xf32>
    %7 = arith.subf %0, %6 : vector<16x128xf32>
    %8 = arith.mulf %7, %7 : vector<16x128xf32>
    %cst_4 = arith.constant dense<0.000000e+00> : vector<16xf32>
    %9 = vector.multi_reduction <add>, %8, %cst_4 [1] : vector<16x128xf32> to vector<16xf32>
    %10 = vector.shape_cast %9 : vector<16xf32> to vector<16x1xf32>
    %cst_5 = arith.constant 1.280000e+02 : f32
    %11 = vector.broadcast %cst_5 : f32 to vector<16x1xf32>
    %12 = arith.divf %10, %11 : vector<16x1xf32>
    %cst_6 = arith.constant 9.99999974E-6 : f32
    %13 = vector.broadcast %cst_6 : f32 to vector<16x1xf32>
    %14 = arith.addf %12, %13 : vector<16x1xf32>
    %15 = math.rsqrt %14 : vector<16x1xf32>
    %16 = vector.broadcast %15 : vector<16x1xf32> to vector<16x128xf32>
    %17 = arith.mulf %7, %16 : vector<16x128xf32>
    %18 = vector.extract_strided_slice %1 {offsets = [0, 0], sizes = [1, 128], strides = [1, 1]} : vector<2x128xf32> to vector<1x128xf32>
    %19 = vector.broadcast %18 : vector<1x128xf32> to vector<16x128xf32>
    %20 = arith.mulf %17, %19 : vector<16x128xf32>
    %21 = vector.extract_strided_slice %1 {offsets = [1, 0], sizes = [1, 128], strides = [1, 1]} : vector<2x128xf32> to vector<1x128xf32>
    %22 = vector.broadcast %21 : vector<1x128xf32> to vector<16x128xf32>
    %23 = arith.addf %20, %22 : vector<16x128xf32>
    %24 = arith.truncf %23 : vector<16x128xf32> to vector<16x128xbf16>
    %c0_7 = arith.constant 0 : index
    %c0_8 = arith.constant 0 : index
    %25 = vector.load %arg4[%c0_7, %c0_8] : memref<128x256xbf16, #tpu.memory_space<vmem>>, vector<128x256xbf16>
    %cst_9 = arith.constant dense<0.000000e+00> : vector<16x256xf32>
    %26 = tpu.matmul %24, %25, %cst_9 {dimension_numbers = #tpu.dot_dimension_numbers<[1], [0], [0], [1], [0, 0, 1, 1], [], []>} : vector<16x128xbf16>, vector<128x256xbf16>, vector<16x256xf32> -> vector<16x256xf32>
    %c0_10 = arith.constant 0 : index
    %c0_11 = arith.constant 0 : index
    %27 = vector.load %arg5[%c0_10, %c0_11] : memref<16x256xf32, #tpu.memory_space<vmem>>, vector<16x256xf32>
    tpu.vector_store %arg5[%c0_10, %c0_11], %26 {strides = array<i32>} : memref<16x256xf32, #tpu.memory_space<vmem>>, vector<16x256xf32>,
    return
  }
  func.func @transform_0(%arg0: i32, %arg1: i32) -> (i32, i32) {
    %c0_i32 = arith.constant 0 : i32
    %c0_i32_0 = arith.constant 0 : i32
    return %arg0, %c0_i32 : i32, i32
  }
  func.func @transform_1(%arg0: i32, %arg1: i32) -> (i32, i32) {
    %c0_i32 = arith.constant 0 : i32
    %c0_i32_0 = arith.constant 0 : i32
    %c0_i32_1 = arith.constant 0 : i32
    return %c0_i32, %c0_i32_0 : i32, i32
  }
  func.func @transform_2(%arg0: i32, %arg1: i32) -> (i32, i32) {
    %c0_i32 = arith.constant 0 : i32
    %c0_i32_0 = arith.constant 0 : i32
    return %c0_i32, %arg1 : i32, i32
  }
  func.func @transform_3(%arg0: i32, %arg1: i32) -> (i32, i32) {
    %c0_i32 = arith.constant 0 : i32
    return %arg0, %arg1 : i32, i32
  }
}

</mosaic_0001>

<llo_original>
// kernel: tpu_custom_call.1
$region0: #{tpu_custom_call.1}
  #allocation0 [shape = 'u32[]', space=smem, size = 0x4, offset = 0x4, fixed_abs, tag = 'smem constant byte address 0x4 - core index']
  #allocation1 [shape = 'u32[144,128]{1,0:T(1,128)}', space=vmem, size = 0x12000, scoped, tag = 'internal scratch']
  %s0 = inlined_call_operand.hbm [shape: f32[16,128], index: 0, kind: input, shape index: {}]
  %s1 = inlined_call_operand.vmem [shape: f32[2,128], index: 1, kind: input, shape index: {}]
  %s2 = inlined_call_operand.hbm [shape: bf16[128,256], index: 2, kind: input, shape index: {}]
  %s3 = inlined_call_operand.hbm [shape: f32[16,256], index: 3, kind: output, shape index: {}]
  %s4 = sld [smem:[#allocation0]]
  $region30: #{tpu_custom_call.1} parent=0
    _
  %s6 = ssub.s32 1, %s4
  %s7 = scalar_select 0, %s6, %s4
  $region1: #{tpu_custom_call.1} parent=0
    #allocation2 [shape = 'u8[8192]{0}', space=vmem, size = 0x2000, scoped, tag = 'input window, operand 0, single buffered']
    #allocation3 [shape = 's32[1]{0}', space=sflag, size = 0x4, scoped, tag = 'scoped memory for tpu_custom_call.1']
    #allocation4 [shape = 's32[1]{0}', space=sflag, size = 0x4, scoped, tag = 'scoped memory for tpu_custom_call.1']
    #allocation5 [shape = 'u8[65536]{0}', space=vmem, size = 0x10000, scoped, tag = 'input window, operand 2, single buffered']
    #allocation6 [shape = 's32[1]{0}', space=sflag, size = 0x4, scoped, tag = 'scoped memory for tpu_custom_call.1']
    #allocation7 [shape = 'u8[16384]{0}', space=vmem, size = 0x4000, scoped, tag = 'output window, operand 0, single buffered']
    %8 = vsyncpa [#allocation3], 0
    %9 = vsyncpa [#allocation6], 0
    %10 = vsyncpa [#allocation4], 0
    // Predicated region
    $region2: #{tpu_custom_call.1} parent=1 // pred_check
      _
    $region3: #{tpu_custom_call.1} parent=1 // pred_check_branch
      %12 = sbr.rel (0) target = $region5
    $region4: #{tpu_custom_call.1} parent=1 // pred_region
      %s14 = ssub.s32 256, 256
      %15 = vsyncadd [#allocation3], %s14
      %s16 = sshll.u32 [#allocation2], 4
      %s17 = int_to_ptr.vmem [resolvable:$true] %s16
      %22 = dma.hbm_to_vmem [thread:$0]  %s0, 256, %s17, [#allocation3], 128, 128, 8
    $region5: #{tpu_custom_call.1} parent=1 // pred_fallthru
      _
    // Predicated region
    $region6: #{tpu_custom_call.1} parent=1 // pred_check
      _
    $region7: #{tpu_custom_call.1} parent=1 // pred_check_branch
      %24 = sbr.rel (0) target = $region9
    $region8: #{tpu_custom_call.1} parent=1 // pred_region
      _
    $region9: #{tpu_custom_call.1} parent=1 // pred_fallthru
      _
    // Predicated region
    $region10: #{tpu_custom_call.1} parent=1 // pred_check
      _
    $region11: #{tpu_custom_call.1} parent=1 // pred_check_branch
      %26 = sbr.rel (0) target = $region13
    $region12: #{tpu_custom_call.1} parent=1 // pred_region
      %s28 = ssub.s32 2048, 2048
      %29 = vsyncadd [#allocation6], %s28
      %s30 = sshll.u32 [#allocation5], 4
      %s31 = int_to_ptr.vmem [resolvable:$true] %s30
      %36 = dma.hbm_to_vmem [thread:$0]  %s2, 2048, %s31, [#allocation6], 128, 128, 8
    $region13: #{tpu_custom_call.1} parent=1 // pred_fallthru
      _
    // Predicated region
    $region14: #{tpu_custom_call.1} parent=1 // pred_check
      _
    $region15: #{tpu_custom_call.1} parent=1 // pred_check_branch
      %38 = sbr.rel (0) target = $region17
    $region16: #{tpu_custom_call.1} parent=1 // pred_region
      %39 = dma.done [#allocation3], 256
    $region17: #{tpu_custom_call.1} parent=1 // pred_fallthru
      _
    // Predicated region
    $region18: #{tpu_custom_call.1} parent=1 // pred_check
      _
    $region19: #{tpu_custom_call.1} parent=1 // pred_check_branch
      %41 = sbr.rel (0) target = $region21
    $region20: #{tpu_custom_call.1} parent=1 // pred_region
      %42 = dma.done [#allocation6], 2048
    $region21: #{tpu_custom_call.1} parent=1 // pred_fallthru
      _
    %v44 = vld [vmem:[#allocation2] sm:$0xff]
    %v45 = vld [vmem:[#allocation2 + $0x8] sm:$0xff]
    %v46 = vld [vmem:[%s1] sm:$0x3]
    %47 = vadd.xlane.f32.xlu0 %v44
    %v48 = vpop.xlane.xlu0 %47
    %49 = vadd.xlane.f32.xlu0 %v45
    %v50 = vpop.xlane.xlu0 %49
    %v51 = vrcp.pop 128.0
    %v52 = vmul.f32 %v48, %v51
    %v53 = vmul.f32 %v50, %v51
    %v54 = vsub.f32 %v44, %v52
    %v55 = vsub.f32 %v45, %v53
    %v56 = vmul.f32 %v54, %v54
    %v57 = vmul.f32 %v55, %v55
    %58 = vadd.xlane.f32.xlu0 %v56
    %v59 = vpop.xlane.xlu0 %58
    %60 = vadd.xlane.f32.xlu0 %v57
    %v61 = vpop.xlane.xlu0 %60
    %v62 = vmul.f32 %v59, %v51
    %v63 = vmul.f32 %v61, %v51
    %v64 = vadd.f32 %v62, 1e-05
    %v65 = vadd.f32 %v63, 1e-05
    %v66 = vrsqrt.pop %v64
    %v67 = vrsqrt.pop %v65
    %v68 = vmul.f32 %v54, %v66
    %v69 = vmul.f32 %v55, %v67
    %v70 = vlaneseq
    %v71 = vshrl.u32 %v70, 7
    %v72 = vsub.s32 0, %v71
    %v73 = vrot.slane %v46, %v72
    %v74 = vmul.f32 %v68, %v73
    %v75 = vmul.f32 %v69, %v73
    %v76 = vlaneseq
    %v77 = vshrl.u32 %v76, 7
    %v78 = vsub.s32 1, %v77
    %v79 = vrot.slane %v46, %v78
    %v80 = vadd.f32 %v74, %v79
    %v81 = vadd.f32 %v75, %v79
    %v82 = vpack.c.bf16 %v81, %v80
    %v83 = vld [vmem:[#allocation5] sm:$0xff]
    %v84 = vld [vmem:[#allocation5 + $0x8] sm:$0xff]
    %v85 = vld [vmem:[#allocation5 + $0x10] sm:$0xff]
    %v86 = vld [vmem:[#allocation5 + $0x18] sm:$0xff]
    %v87 = vld [vmem:[#allocation5 + $0x20] sm:$0xff]
    %v88 = vld [vmem:[#allocation5 + $0x28] sm:$0xff]
    %v89 = vld [vmem:[#allocation5 + $0x30] sm:$0xff]
    %v90 = vld [vmem:[#allocation5 + $0x38] sm:$0xff]
    %v91 = vld [vmem:[#allocation5 + $0x40] sm:$0xff]
    %v92 = vld [vmem:[#allocation5 + $0x48] sm:$0xff]
    %v93 = vld [vmem:[#allocation5 + $0x50] sm:$0xff]
    %v94 = vld [vmem:[#allocation5 + $0x58] sm:$0xff]
    %v95 = vld [vmem:[#allocation5 + $0x60] sm:$0xff]
    %v96 = vld [vmem:[#allocation5 + $0x68] sm:$0xff]
    %v97 = vld [vmem:[#allocation5 + $0x70] sm:$0xff]
    %v98 = vld [vmem:[#allocation5 + $0x78] sm:$0xff]
    %v115 = vunpack.c.l.b16 %v83
    %v116 = vunpack.c.h.b16 %v83
    %v117 = vunpack.c.l.b16 %v84
    %v118 = vunpack.c.h.b16 %v84
    %v119 = vunpack.c.l.b16 %v85
    %v120 = vunpack.c.h.b16 %v85
    %v121 = vunpack.c.l.b16 %v86
    %v122 = vunpack.c.h.b16 %v86
    %v123 = vunpack.c.l.b16 %v87
    %v124 = vunpack.c.h.b16 %v87
    %v125 = vunpack.c.l.b16 %v88
    %v126 = vunpack.c.h.b16 %v88
    %v127 = vunpack.c.l.b16 %v89
    %v128 = vunpack.c.h.b16 %v89
    %v129 = vunpack.c.l.b16 %v90
    %v130 = vunpack.c.h.b16 %v90
    %v131 = vunpack.c.l.b16 %v91
    %v132 = vunpack.c.h.b16 %v91
    %v133 = vunpack.c.l.b16 %v92
    %v134 = vunpack.c.h.b16 %v92
    %v135 = vunpack.c.l.b16 %v93
    %v136 = vunpack.c.h.b16 %v93
    %v137 = vunpack.c.l.b16 %v94
    %v138 = vunpack.c.h.b16 %v94
    %v139 = vunpack.c.l.b16 %v95
    %v140 = vunpack.c.h.b16 %v95
    %v141 = vunpack.c.l.b16 %v96
    %v142 = vunpack.c.h.b16 %v96
    %v143 = vunpack.c.l.b16 %v97
    %v144 = vunpack.c.h.b16 %v97
    %v145 = vunpack.c.l.b16 %v98
    %v146 = vunpack.c.h.b16 %v98
    %v147 = vpack.c.b16 %v117, %v115
    %v148 = vpack.c.b16 %v118, %v116
    %v149 = vpack.c.b16 %v121, %v119
    %v150 = vpack.c.b16 %v122, %v120
    %v151 = vpack.c.b16 %v125, %v123
    %v152 = vpack.c.b16 %v126, %v124
    %v153 = vpack.c.b16 %v129, %v127
    %v154 = vpack.c.b16 %v130, %v128
    %v155 = vpack.c.b16 %v133, %v131
    %v156 = vpack.c.b16 %v134, %v132
    %v157 = vpack.c.b16 %v137, %v135
    %v158 = vpack.c.b16 %v138, %v136
    %v159 = vpack.c.b16 %v141, %v139
    %v160 = vpack.c.b16 %v142, %v140
    %v161 = vpack.c.b16 %v145, %v143
    %v162 = vpack.c.b16 %v146, %v144
    %179 = vmatprep.subr.bf16.mxu0 %v148
    %180 = vmatpush1.bf16.msra.mxu0 %v147
    %181 = vmatprep.subr.bf16.mxu0 %v150
    %182 = vmatpush1.bf16.msra.mxu0 %v149
    %183 = vmatprep.subr.bf16.mxu0 %v152
    %184 = vmatpush1.bf16.msra.mxu0 %v151
    %185 = vmatprep.subr.bf16.mxu0 %v154
    %186 = vmatpush1.bf16.msra.mxu0 %v153
    %187 = vmatprep.subr.bf16.mxu0 %v156
    %188 = vmatpush1.bf16.msra.mxu0 %v155
    %189 = vmatprep.subr.bf16.mxu0 %v158
    %190 = vmatpush1.bf16.msra.mxu0 %v157
    %191 = vmatprep.subr.bf16.mxu0 %v160
    %192 = vmatpush1.bf16.msra.mxu0 %v159
    %193 = vmatprep.subr.bf16.mxu0 %v162
    %194 = vmatpush1.bf16.msra.mxu0 %v161
    %195 = vmatprep.subr.bf16.mxu0 0
    %196 = vmatpush1.bf16.msra.mxu0 0
    %197 = vmatprep.subr.bf16.mxu0 0
    %198 = vmatpush1.bf16.msra.mxu0 0
    %199 = vmatprep.subr.bf16.mxu0 0
    %200 = vmatpush1.bf16.msra.mxu0 0
    %201 = vmatprep.subr.bf16.mxu0 0
    %202 = vmatpush1.bf16.msra.mxu0 0
    %203 = vmatprep.subr.bf16.mxu0 0
    %204 = vmatpush1.bf16.msra.mxu0 0
    %205 = vmatprep.subr.bf16.mxu0 0
    %206 = vmatpush1.bf16.msra.mxu0 0
    %207 = vmatprep.subr.bf16.mxu0 0
    %208 = vmatpush1.bf16.msra.mxu0 0
    %209 = vmatprep.subr.bf16.mxu0 0
    %210 = vmatpush1.bf16.msra.mxu0 0
    %211 = vmatprep.mubr.bf16.mxu0 0
    %212 = vmatmul.mubr.bf16.gmra.mrb[0].mxu0 %v82
    %v213 = vpop.f32.mrb[0].mxu0
    %v214 = vadd.f32 0.0, %v213
    %v215 = vpop.f32.mrb[0].mxu0
    %v216 = vadd.f32 0.0, %v215
    %v217 = vpop.f32.mrb[0].mxu0
    %v218 = vadd.f32 0.0, %v217
    %v219 = vpop.f32.mrb[0].mxu0
    %v220 = vadd.f32 0.0, %v219
    %221 = vdwg.mxu0
    %222 = vst [vmem:[#allocation7] sm:$0xff] %v214
    %223 = vst [vmem:[#allocation7 + $0x8] sm:$0xff] %v216
    %224 = vst [vmem:[#allocation7 + $0x10] sm:$0xff] %v218
    %225 = vst [vmem:[#allocation7 + $0x18] sm:$0xff] %v220
    // Predicated region
    $region22: #{tpu_custom_call.1} parent=1 // pred_check
      _
    $region23: #{tpu_custom_call.1} parent=1 // pred_check_branch
      %227 = sbr.rel (0) target = $region25
    $region24: #{tpu_custom_call.1} parent=1 // pred_region
      %s229 = ssub.s32 512, 512
      %230 = vsyncadd [#allocation4], %s229
      %s231 = sshll.u32 [#allocation7], 4
      %s232 = int_to_ptr.vmem [resolvable:$true] %s231
      %237 = dma.vmem_to_hbm [thread:$0]  %s232, 512, %s3, [#allocation4], 256, 256, 16
    $region25: #{tpu_custom_call.1} parent=1 // pred_fallthru
      _
    // Predicated region
    $region26: #{tpu_custom_call.1} parent=1 // pred_check
      _
    $region27: #{tpu_custom_call.1} parent=1 // pred_check_branch
      %239 = sbr.rel (0) target = $region29
    $region28: #{tpu_custom_call.1} parent=1 // pred_region
      %240 = dma.done [#allocation4], 512
    $region29: #{tpu_custom_call.1} parent=1 // pred_fallthru
      _
    %241 = vsyncpa [#allocation3], 1
    %242 = vsyncpa [#allocation6], 1
    %243 = vsyncpa [#allocation4], 1

</llo_original>
